<compile_context>
chip_gen: v7x
topology: tpu7x:2x2x1
jax: 0.10.0
libtpu: 0.0.40
codegen_flags: <defaults>
</compile_context>

<pallas_src>
import functools

import jax
import jax.numpy as jnp
from jax.experimental import pallas as pl
from jax.experimental.pallas import tpu as pltpu

# ---- "args" (small, deterministic synthetic configuration) -----------------
FM_FEATURE_SIZE = 20          # args.fm_feature_size
GENRE_DIM = FM_FEATURE_SIZE - 2
MAX_UID = 100                 # args.max_uid
MAX_MID = 200                 # args.max_mid
U_EMB = 16                    # args.u_emb_dim
M_EMB = 16                    # args.m_emb_dim
G_EMB = 16                    # args.g_emb_dim
LAYERS = [32, 16]             # args.layers = "32,16"
INPUT_HIDDEN = U_EMB + M_EMB + G_EMB
BATCH = 8
OUT_LANES = 128               # lane-dense output width (sliced to 1 outside)


def init_params(key):
    """Raw parameters, matching the PyTorch module's layout (Linear weights
    stored pre-transposed to [in, out])."""
    ks = jax.random.split(key, 10)
    p = {}
    p["u_emb"] = jax.random.normal(ks[0], (MAX_UID + 1, U_EMB), jnp.float32) * 0.1
    p["m_emb"] = jax.random.normal(ks[1], (MAX_MID + 1, M_EMB), jnp.float32) * 0.1
    p["wg"] = jax.random.normal(ks[2], (GENRE_DIM, G_EMB), jnp.float32) * 0.1
    p["bg"] = jax.random.normal(ks[3], (1, G_EMB), jnp.float32) * 0.1
    p["w0"] = jax.random.normal(ks[4], (INPUT_HIDDEN, LAYERS[0]), jnp.float32) * 0.1
    p["b0"] = jax.random.normal(ks[5], (1, LAYERS[0]), jnp.float32) * 0.1
    p["w1"] = jax.random.normal(ks[6], (LAYERS[0], LAYERS[1]), jnp.float32) * 0.1
    p["b1"] = jax.random.normal(ks[7], (1, LAYERS[1]), jnp.float32) * 0.1
    p["w2"] = jax.random.normal(ks[8], (LAYERS[1], 1), jnp.float32) * 0.1
    p["b2"] = jax.random.normal(ks[9], (1, 1), jnp.float32) * 0.1
    return p


def prepare_fused(p):
    """One-time algebraic fusion (done at init, not per forward call):
         h0 = uemb@W0u + iemb@W0m + (genres@Wg + bg)@W0g + b0
            = onehot_u @ (Uemb@W0u) + onehot_m @ (Memb@W0m)
              + genres @ (Wg@W0g) + (b0 + bg@W0g)
    """
    w0 = p["w0"]
    w0_u = w0[:U_EMB]
    w0_m = w0[U_EMB:U_EMB + M_EMB]
    w0_g = w0[U_EMB + M_EMB:]
    return {
        "u_fused": p["u_emb"] @ w0_u,          # (MAX_UID+1, L0)
        "m_fused": p["m_emb"] @ w0_m,          # (MAX_MID+1, L0)
        "wg0":     p["wg"] @ w0_g,             # (GENRE_DIM, L0)
        "b0f":     p["b0"] + p["bg"] @ w0_g,   # (1, L0)
        "w1":      p["w1"],                    # (L0, L1)
        "b1":      p["b1"],                    # (1, L1)
        "w2row":   p["w2"].T,                  # (1, L1)
        "b2":      p["b2"],                    # (1, 1)
    }


def _mlp_kernel(u_col, i_col, g_col, n_u, n_m,
                x_ref, uf_ref, mf_ref, wg0_ref, b0_ref,
                w1_ref, b1_ref, w2r_ref, b2_ref, out_ref):
    xv = x_ref[...]                                    # (TB, C) f32
    tb = xv.shape[0]
    uids = xv[:, u_col:i_col].astype(jnp.int32)        # (TB, 1)
    iids = xv[:, i_col:g_col].astype(jnp.int32)        # (TB, 1)
    genres = xv[:, g_col:]                             # (TB, GENRE_DIM)

    # Embedding "gathers" fused into the kernel as one-hot matmuls against
    # VMEM-resident tables (already folded through their W0 slices).
    oh_u = (jax.lax.broadcasted_iota(jnp.int32, (tb, n_u), 1) == uids
            ).astype(jnp.float32)
    oh_m = (jax.lax.broadcasted_iota(jnp.int32, (tb, n_m), 1) == iids
            ).astype(jnp.float32)

    h = jnp.dot(oh_u, uf_ref[...], preferred_element_type=jnp.float32)
    h = h + jnp.dot(oh_m, mf_ref[...], preferred_element_type=jnp.float32)
    h = h + jnp.dot(genres, wg0_ref[...], preferred_element_type=jnp.float32)
    h = h + b0_ref[...]
    h = jnp.maximum(h, 0.0)                            # ReLU (Dropout = id in eval)

    h = jnp.dot(h, w1_ref[...], preferred_element_type=jnp.float32) + b1_ref[...]
    h = jnp.maximum(h, 0.0)

    # Final Linear(L1, 1): VPU multiply + lane reduce (no N=1 MXU pass).
    y = jnp.sum(h * w2r_ref[...], axis=-1, keepdims=True) + b2_ref[...]
    # Lane-dense store: broadcast the scalar column across the 128-lane tile.
    out_ref[...] = jnp.broadcast_to(y, out_ref.shape)


def mlp_forward(x, fused, *, batch_tile=512):
    B, C = x.shape
    TB = B if B <= batch_tile else batch_tile
    assert B % TB == 0, "demo wrapper expects batch divisible by the tile"

    u_col = C - FM_FEATURE_SIZE
    i_col = u_col + 1
    g_col = u_col + 2
    n_u = fused["u_fused"].shape[0]
    n_m = fused["m_fused"].shape[0]

    kernel = functools.partial(_mlp_kernel, u_col, i_col, g_col, n_u, n_m)

    def resident(shape):  # loaded once, stays in VMEM across batch tiles
        return pl.BlockSpec(shape, lambda i, _nd=len(shape): (0,) * _nd)

    out = pl.pallas_call(
        kernel,
        grid=(B // TB,),
        in_specs=[
            pl.BlockSpec((TB, C), lambda i: (i, 0)),       # x (batch-tiled)
            resident(fused["u_fused"].shape),
            resident(fused["m_fused"].shape),
            resident(fused["wg0"].shape),
            resident(fused["b0f"].shape),
            resident(fused["w1"].shape),
            resident(fused["b1"].shape),
            resident(fused["w2row"].shape),
            resident(fused["b2"].shape),
        ],
        out_specs=pl.BlockSpec((TB, OUT_LANES), lambda i: (i, 0)),
        out_shape=jax.ShapeDtypeStruct((B, OUT_LANES), jnp.float32),
        compiler_params=pltpu.CompilerParams(
            dimension_semantics=("parallel",)),
    )(x.astype(jnp.float32), fused["u_fused"], fused["m_fused"], fused["wg0"],
      fused["b0f"], fused["w1"], fused["b1"], fused["w2row"], fused["b2"])

    return out[:, :1]                                      # (B, 1)


def reference_forward(x, p):
    """Pure-JAX reference with the original (unfused) structure."""
    uids = x[:, -FM_FEATURE_SIZE].astype(jnp.int32)
    iids = x[:, -(FM_FEATURE_SIZE - 1)].astype(jnp.int32)
    genres = x[:, -(FM_FEATURE_SIZE - 2):].astype(jnp.float32)
    uemb = p["u_emb"][uids]
    iemb = p["m_emb"][iids]
    gemb = genres @ p["wg"] + p["bg"]
    h = jnp.concatenate([uemb, iemb, gemb], axis=1)
    h = jnp.maximum(h @ p["w0"] + p["b0"], 0.0)
    h = jnp.maximum(h @ p["w1"] + p["b1"], 0.0)
    return h @ p["w2"] + p["b2"]


if __name__ == "__main__":
    key = jax.random.PRNGKey(0)
    kp, ku, ki, kg = jax.random.split(key, 4)
    params = init_params(kp)
    fused = prepare_fused(params)

    # Build x: [B, fm_feature_size] = [uid, iid, genres...]
    uids = jax.random.randint(ku, (BATCH,), 0, MAX_UID + 1).astype(jnp.float32)
    iids = jax.random.randint(ki, (BATCH,), 0, MAX_MID + 1).astype(jnp.float32)
    genres = jax.random.bernoulli(kg, 0.3, (BATCH, GENRE_DIM)).astype(jnp.float32)
    x = jnp.concatenate([uids[:, None], iids[:, None], genres], axis=1)

    y = mlp_forward(x, fused)
    jax.block_until_ready(y)
    assert y.shape == (BATCH, 1)

    y_ref = reference_forward(x, params)
    assert jnp.allclose(y, y_ref, atol=1e-2, rtol=1e-2), (y, y_ref)
    print("KERNEL_OK")
</pallas_src>

<mosaic_0001>
module attributes {stable_mosaic.version = 11 : i64} {
  func.func @_mlp_kernel(%arg0: i32, %arg1: memref<8x20xf32, #tpu.memory_space<vmem>>, %arg2: memref<101x32xf32, #tpu.memory_space<vmem>>, %arg3: memref<201x32xf32, #tpu.memory_space<vmem>>, %arg4: memref<18x32xf32, #tpu.memory_space<vmem>>, %arg5: memref<1x32xf32, #tpu.memory_space<vmem>>, %arg6: memref<32x16xf32, #tpu.memory_space<vmem>>, %arg7: memref<1x16xf32, #tpu.memory_space<vmem>>, %arg8: memref<1x16xf32, #tpu.memory_space<vmem>>, %arg9: memref<1x1xf32, #tpu.memory_space<vmem>>, %arg10: memref<8x128xf32, #tpu.memory_space<vmem>>) attributes {dimension_semantics = [#tpu.dimension_semantics<parallel>], iteration_bounds = array<i64: 1>, scalar_prefetch = 0 : i64, scratch_operands = 0 : i64, tpu.core_type = #tpu.core_type<tc>, window_params = [{transform_indices = @transform_0, window_bounds = array<i64: 8, 20>}, {pipeline_mode = #tpu.pipeline_mode<synchronous>, transform_indices = @transform_1, window_bounds = array<i64: 101, 32>}, {pipeline_mode = #tpu.pipeline_mode<synchronous>, transform_indices = @transform_2, window_bounds = array<i64: 201, 32>}, {pipeline_mode = #tpu.pipeline_mode<synchronous>, transform_indices = @transform_3, window_bounds = array<i64: 18, 32>}, {pipeline_mode = #tpu.pipeline_mode<synchronous>, transform_indices = @transform_4, window_bounds = array<i64: 1, 32>}, {pipeline_mode = #tpu.pipeline_mode<synchronous>, transform_indices = @transform_5, window_bounds = array<i64: 32, 16>}, {pipeline_mode = #tpu.pipeline_mode<synchronous>, transform_indices = @transform_6, window_bounds = array<i64: 1, 16>}, {pipeline_mode = #tpu.pipeline_mode<synchronous>, transform_indices = @transform_7, window_bounds = array<i64: 1, 16>}, {pipeline_mode = #tpu.pipeline_mode<synchronous>, transform_indices = @transform_8, window_bounds = array<i64: 1, 1>}, {transform_indices = @transform_9, window_bounds = array<i64: 8, 128>}]} {
    %c0 = arith.constant 0 : index
    %c0_0 = arith.constant 0 : index
    %0 = vector.load %arg1[%c0, %c0_0] : memref<8x20xf32, #tpu.memory_space<vmem>>, vector<8x20xf32>
    %1 = vector.extract_strided_slice %0 {offsets = [0, 0], sizes = [8, 1], strides = [1, 1]} : vector<8x20xf32> to vector<8x1xf32>
    %2 = arith.fptosi %1 : vector<8x1xf32> to vector<8x1xi32>
    %3 = vector.extract_strided_slice %0 {offsets = [0, 1], sizes = [8, 1], strides = [1, 1]} : vector<8x20xf32> to vector<8x1xf32>
    %4 = arith.fptosi %3 : vector<8x1xf32> to vector<8x1xi32>
    %5 = vector.extract_strided_slice %0 {offsets = [0, 2], sizes = [8, 18], strides = [1, 1]} : vector<8x20xf32> to vector<8x18xf32>
    %6 = tpu.iota {dimensions = array<i32: 1>} : vector<8x101xi32>
    %7 = vector.broadcast %2 : vector<8x1xi32> to vector<8x101xi32>
    %8 = arith.cmpi eq, %6, %7 : vector<8x101xi32>
    %9 = arith.extui %8 : vector<8x101xi1> to vector<8x101xi32>
    %10 = arith.sitofp %9 : vector<8x101xi32> to vector<8x101xf32>
    %11 = tpu.iota {dimensions = array<i32: 1>} : vector<8x201xi32>
    %12 = vector.broadcast %4 : vector<8x1xi32> to vector<8x201xi32>
    %13 = arith.cmpi eq, %11, %12 : vector<8x201xi32>
    %14 = arith.extui %13 : vector<8x201xi1> to vector<8x201xi32>
    %15 = arith.sitofp %14 : vector<8x201xi32> to vector<8x201xf32>
    %c0_1 = arith.constant 0 : index
    %c0_2 = arith.constant 0 : index
    %16 = vector.load %arg2[%c0_1, %c0_2] : memref<101x32xf32, #tpu.memory_space<vmem>>, vector<101x32xf32>
    %cst = arith.constant dense<0.000000e+00> : vector<8x32xf32>
    %17 = tpu.matmul %10, %16, %cst {dimension_numbers = #tpu.dot_dimension_numbers<[1], [0], [0], [1], [0, 0, 1, 1], [], []>} : vector<8x101xf32>, vector<101x32xf32>, vector<8x32xf32> -> vector<8x32xf32>
    %c0_3 = arith.constant 0 : index
    %c0_4 = arith.constant 0 : index
    %18 = vector.load %arg3[%c0_3, %c0_4] : memref<201x32xf32, #tpu.memory_space<vmem>>, vector<201x32xf32>
    %cst_5 = arith.constant dense<0.000000e+00> : vector<8x32xf32>
    %19 = tpu.matmul %15, %18, %cst_5 {dimension_numbers = #tpu.dot_dimension_numbers<[1], [0], [0], [1], [0, 0, 1, 1], [], []>} : vector<8x201xf32>, vector<201x32xf32>, vector<8x32xf32> -> vector<8x32xf32>
    %20 = arith.addf %17, %19 : vector<8x32xf32>
    %c0_6 = arith.constant 0 : index
    %c0_7 = arith.constant 0 : index
    %21 = vector.load %arg4[%c0_6, %c0_7] : memref<18x32xf32, #tpu.memory_space<vmem>>, vector<18x32xf32>
    %cst_8 = arith.constant dense<0.000000e+00> : vector<8x32xf32>
    %22 = tpu.matmul %5, %21, %cst_8 {dimension_numbers = #tpu.dot_dimension_numbers<[1], [0], [0], [1], [0, 0, 1, 1], [], []>} : vector<8x18xf32>, vector<18x32xf32>, vector<8x32xf32> -> vector<8x32xf32>
    %23 = arith.addf %20, %22 : vector<8x32xf32>
    %c0_9 = arith.constant 0 : index
    %c0_10 = arith.constant 0 : index
    %24 = vector.load %arg5[%c0_9, %c0_10] : memref<1x32xf32, #tpu.memory_space<vmem>>, vector<1x32xf32>
    %25 = vector.broadcast %24 : vector<1x32xf32> to vector<8x32xf32>
    %26 = arith.addf %23, %25 : vector<8x32xf32>
    %cst_11 = arith.constant 0.000000e+00 : f32
    %27 = vector.broadcast %cst_11 : f32 to vector<8x32xf32>
    %28 = arith.maximumf %26, %27 : vector<8x32xf32>
    %c0_12 = arith.constant 0 : index
    %c0_13 = arith.constant 0 : index
    %29 = vector.load %arg6[%c0_12, %c0_13] : memref<32x16xf32, #tpu.memory_space<vmem>>, vector<32x16xf32>
    %cst_14 = arith.constant dense<0.000000e+00> : vector<8x16xf32>
    %30 = tpu.matmul %28, %29, %cst_14 {dimension_numbers = #tpu.dot_dimension_numbers<[1], [0], [0], [1], [0, 0, 1, 1], [], []>} : vector<8x32xf32>, vector<32x16xf32>, vector<8x16xf32> -> vector<8x16xf32>
    %c0_15 = arith.constant 0 : index
    %c0_16 = arith.constant 0 : index
    %31 = vector.load %arg7[%c0_15, %c0_16] : memref<1x16xf32, #tpu.memory_space<vmem>>, vector<1x16xf32>
    %32 = vector.broadcast %31 : vector<1x16xf32> to vector<8x16xf32>
    %33 = arith.addf %30, %32 : vector<8x16xf32>
    %cst_17 = arith.constant 0.000000e+00 : f32
    %34 = vector.broadcast %cst_17 : f32 to vector<8x16xf32>
    %35 = arith.maximumf %33, %34 : vector<8x16xf32>
    %c0_18 = arith.constant 0 : index
    %c0_19 = arith.constant 0 : index
    %36 = vector.load %arg8[%c0_18, %c0_19] : memref<1x16xf32, #tpu.memory_space<vmem>>, vector<1x16xf32>
    %37 = vector.broadcast %36 : vector<1x16xf32> to vector<8x16xf32>
    %38 = arith.mulf %35, %37 : vector<8x16xf32>
    %cst_20 = arith.constant dense<0.000000e+00> : vector<8xf32>
    %39 = vector.multi_reduction <add>, %38, %cst_20 [1] : vector<8x16xf32> to vector<8xf32>
    %40 = vector.shape_cast %39 : vector<8xf32> to vector<8x1xf32>
    %c0_21 = arith.constant 0 : index
    %c0_22 = arith.constant 0 : index
    %41 = vector.load %arg9[%c0_21, %c0_22] : memref<1x1xf32, #tpu.memory_space<vmem>>, vector<1x1xf32>
    %42 = vector.broadcast %41 : vector<1x1xf32> to vector<8x1xf32>
    %43 = arith.addf %40, %42 : vector<8x1xf32>
    %44 = vector.shape_cast %43 : vector<8x1xf32> to vector<8x1xf32>
    %45 = vector.broadcast %44 : vector<8x1xf32> to vector<8x128xf32>
    %c0_23 = arith.constant 0 : index
    %c0_24 = arith.constant 0 : index
    %46 = vector.load %arg10[%c0_23, %c0_24] : memref<8x128xf32, #tpu.memory_space<vmem>>, vector<8x128xf32>
    tpu.vector_store %arg10[%c0_23, %c0_24], %45 {strides = array<i32>} : memref<8x128xf32, #tpu.memory_space<vmem>>, vector<8x128xf32>,
    return
  }
  func.func @transform_0(%arg0: i32) -> (i32, i32) {
    %c0_i32 = arith.constant 0 : i32
    %c0_i32_0 = arith.constant 0 : i32
    return %arg0, %c0_i32 : i32, i32
  }
  func.func @transform_1(%arg0: i32) -> (i32, i32) {
    %c0_i32 = arith.constant 0 : i32
    %c0_i32_0 = arith.constant 0 : i32
    %c0_i32_1 = arith.constant 0 : i32
    return %c0_i32, %c0_i32_0 : i32, i32
  }
  func.func @transform_2(%arg0: i32) -> (i32, i32) {
    %c0_i32 = arith.constant 0 : i32
    %c0_i32_0 = arith.constant 0 : i32
    %c0_i32_1 = arith.constant 0 : i32
    return %c0_i32, %c0_i32_0 : i32, i32
  }
  func.func @transform_3(%arg0: i32) -> (i32, i32) {
    %c0_i32 = arith.constant 0 : i32
    %c0_i32_0 = arith.constant 0 : i32
    %c0_i32_1 = arith.constant 0 : i32
    return %c0_i32, %c0_i32_0 : i32, i32
  }
  func.func @transform_4(%arg0: i32) -> (i32, i32) {
    %c0_i32 = arith.constant 0 : i32
    %c0_i32_0 = arith.constant 0 : i32
    %c0_i32_1 = arith.constant 0 : i32
    return %c0_i32, %c0_i32_0 : i32, i32
  }
  func.func @transform_5(%arg0: i32) -> (i32, i32) {
    %c0_i32 = arith.constant 0 : i32
    %c0_i32_0 = arith.constant 0 : i32
    %c0_i32_1 = arith.constant 0 : i32
    return %c0_i32, %c0_i32_0 : i32, i32
  }
  func.func @transform_6(%arg0: i32) -> (i32, i32) {
    %c0_i32 = arith.constant 0 : i32
    %c0_i32_0 = arith.constant 0 : i32
    %c0_i32_1 = arith.constant 0 : i32
    return %c0_i32, %c0_i32_0 : i32, i32
  }
  func.func @transform_7(%arg0: i32) -> (i32, i32) {
    %c0_i32 = arith.constant 0 : i32
    %c0_i32_0 = arith.constant 0 : i32
    %c0_i32_1 = arith.constant 0 : i32
    return %c0_i32, %c0_i32_0 : i32, i32
  }
  func.func @transform_8(%arg0: i32) -> (i32, i32) {
    %c0_i32 = arith.constant 0 : i32
    %c0_i32_0 = arith.constant 0 : i32
    %c0_i32_1 = arith.constant 0 : i32
    return %c0_i32, %c0_i32_0 : i32, i32
  }
  func.func @transform_9(%arg0: i32) -> (i32, i32) {
    %c0_i32 = arith.constant 0 : i32
    %c0_i32_0 = arith.constant 0 : i32
    return %arg0, %c0_i32 : i32, i32
  }
}

</mosaic_0001>

<llo_original>
// kernel: tpu_custom_call.1
$region0: #{tpu_custom_call.1}
  #allocation0 [shape = 'u32[]', space=smem, size = 0x4, offset = 0x4, fixed_abs, tag = 'smem constant byte address 0x4 - core index']
  #allocation1 [shape = 'u32[144,128]{1,0:T(1,128)}', space=vmem, size = 0x12000, scoped, tag = 'internal scratch']
  #allocation2 [shape = 'f32[1,1]{1,0:T(1,128)S(1)}', space=vmem, size = 0x200, scoped, tag = 'scoped memory for tpu_custom_call.1']
  %s0 = inlined_call_operand.vmem [shape: f32[8,20], index: 0, kind: input, shape index: {}]
  %s1 = inlined_call_operand.vmem [shape: f32[101,32], index: 1, kind: input, shape index: {}]
  %s2 = inlined_call_operand.vmem [shape: f32[201,32], index: 2, kind: input, shape index: {}]
  %s3 = inlined_call_operand.vmem [shape: f32[18,32], index: 3, kind: input, shape index: {}]
  %s4 = inlined_call_operand.vmem [shape: f32[1,32], index: 4, kind: input, shape index: {}]
  %s5 = inlined_call_operand.vmem [shape: f32[32,16], index: 5, kind: input, shape index: {}]
  %s6 = inlined_call_operand.vmem [shape: f32[1,16], index: 6, kind: input, shape index: {}]
  %s7 = inlined_call_operand.vmem [shape: f32[1,16], index: 7, kind: input, shape index: {}]
  %s8 = inlined_call_operand.<no memory space> [shape: f32[1,1], index: 8, kind: input, shape index: {}]
  %s9 = inlined_call_operand.hbm [shape: f32[8,128], index: 9, kind: output, shape index: {}]
  %s10 = sld [smem:[#allocation0]]
  $region46: #{tpu_custom_call.1} parent=0
    _
  %s12 = ssub.s32 1, %s10
  %s13 = scalar_select 0, %s12, %s10
  %v14 = vstv %s8
  %15 = vst [vmem:[#allocation2] sm:$0x1] %v14
  $region1: #{tpu_custom_call.1} parent=0
    #allocation3 [shape = 'u8[4096]{0}', space=vmem, size = 0x1000, scoped, tag = 'output window, operand 0, single buffered']
    #allocation4 [shape = 's32[1]{0}', space=sflag, size = 0x4, scoped, tag = 'scoped memory for tpu_custom_call.1']
    %16 = vsyncpa [#allocation4], 0
    // Predicated region
    $region2: #{tpu_custom_call.1} parent=1 // pred_check
      _
    $region3: #{tpu_custom_call.1} parent=1 // pred_check_branch
      %18 = sbr.rel (0) target = $region5
    $region4: #{tpu_custom_call.1} parent=1 // pred_region
      _
    $region5: #{tpu_custom_call.1} parent=1 // pred_fallthru
      _
    // Predicated region
    $region6: #{tpu_custom_call.1} parent=1 // pred_check
      _
    $region7: #{tpu_custom_call.1} parent=1 // pred_check_branch
      %20 = sbr.rel (0) target = $region9
    $region8: #{tpu_custom_call.1} parent=1 // pred_region
      _
    $region9: #{tpu_custom_call.1} parent=1 // pred_fallthru
      _
    // Predicated region
    $region10: #{tpu_custom_call.1} parent=1 // pred_check
      _
    $region11: #{tpu_custom_call.1} parent=1 // pred_check_branch
      %22 = sbr.rel (0) target = $region13
    $region12: #{tpu_custom_call.1} parent=1 // pred_region
      _
    $region13: #{tpu_custom_call.1} parent=1 // pred_fallthru
      _
    // Predicated region
    $region14: #{tpu_custom_call.1} parent=1 // pred_check
      _
    $region15: #{tpu_custom_call.1} parent=1 // pred_check_branch
      %24 = sbr.rel (0) target = $region17
    $region16: #{tpu_custom_call.1} parent=1 // pred_region
      _
    $region17: #{tpu_custom_call.1} parent=1 // pred_fallthru
      _
    // Predicated region
    $region18: #{tpu_custom_call.1} parent=1 // pred_check
      _
    $region19: #{tpu_custom_call.1} parent=1 // pred_check_branch
      %26 = sbr.rel (0) target = $region21
    $region20: #{tpu_custom_call.1} parent=1 // pred_region
      _
    $region21: #{tpu_custom_call.1} parent=1 // pred_fallthru
      _
    // Predicated region
    $region22: #{tpu_custom_call.1} parent=1 // pred_check
      _
    $region23: #{tpu_custom_call.1} parent=1 // pred_check_branch
      %28 = sbr.rel (0) target = $region25
    $region24: #{tpu_custom_call.1} parent=1 // pred_region
      _
    $region25: #{tpu_custom_call.1} parent=1 // pred_fallthru
      _
    // Predicated region
    $region26: #{tpu_custom_call.1} parent=1 // pred_check
      _
    $region27: #{tpu_custom_call.1} parent=1 // pred_check_branch
      %30 = sbr.rel (0) target = $region29
    $region28: #{tpu_custom_call.1} parent=1 // pred_region
      _
    $region29: #{tpu_custom_call.1} parent=1 // pred_fallthru
      _
    // Predicated region
    $region30: #{tpu_custom_call.1} parent=1 // pred_check
      _
    $region31: #{tpu_custom_call.1} parent=1 // pred_check_branch
      %32 = sbr.rel (0) target = $region33
    $region32: #{tpu_custom_call.1} parent=1 // pred_region
      _
    $region33: #{tpu_custom_call.1} parent=1 // pred_fallthru
      _
    // Predicated region
    $region34: #{tpu_custom_call.1} parent=1 // pred_check
      _
    $region35: #{tpu_custom_call.1} parent=1 // pred_check_branch
      %34 = sbr.rel (0) target = $region37
    $region36: #{tpu_custom_call.1} parent=1 // pred_region
      _
    $region37: #{tpu_custom_call.1} parent=1 // pred_fallthru
      _
    %v35 = vld [vmem:[%s0] sm:$0xff]
    %v36 = vcvt.f32.s32.to.zero.pseudo %v35
    %v37 = vlaneseq
    %v38 = vand.u32 %v37, 127
    %39 = vset.pattern.permute.xlu0 0
    %40 = vperm.xlu0 %39, %v36
    %v41 = vpop.permute.xlu0 %40
    %vm42 = vcmp.eq.s32.totalorder %v38, %v41
    %v43 = vsel %vm42, 1, 0
    %v44 = vcvt.s32.f32 %v43
    %v45 = vadd.s32 %v38, 128
    %46 = vset.pattern.permute.xlu0 1
    %47 = vperm.xlu0 %46, %v36
    %v48 = vpop.permute.xlu0 %47
    %vm49 = vcmp.eq.s32.totalorder %v38, %v48
    %vm50 = vcmp.eq.s32.totalorder %v45, %v48
    %v51 = vsel %vm49, 1, 0
    %v52 = vsel %vm50, 1, 0
    %v53 = vcvt.s32.f32 %v51
    %v54 = vcvt.s32.f32 %v52
    %v55 = vld [vmem:[%s1] sm:$0xff]
    %v56 = vld [vmem:[%s1 + $0x8] sm:$0xff]
    %v57 = vld [vmem:[%s1 + $0x10] sm:$0xff]
    %v58 = vld [vmem:[%s1 + $0x18] sm:$0xff]
    %v59 = vld [vmem:[%s1 + $0x20] sm:$0xff]
    %v60 = vld [vmem:[%s1 + $0x28] sm:$0xff]
    %v61 = vld [vmem:[%s1 + $0x30] sm:$0xff]
    %v62 = vld [vmem:[%s1 + $0x38] sm:$0xff]
    %v63 = vld [vmem:[%s1 + $0x40] sm:$0xff]
    %v64 = vld [vmem:[%s1 + $0x48] sm:$0xff]
    %v65 = vld [vmem:[%s1 + $0x50] sm:$0xff]
    %v66 = vld [vmem:[%s1 + $0x58] sm:$0xff]
    %v67 = vld [vmem:[%s1 + $0x60] sm:$0x1f]
    %v68 = vld [vmem:[%s2] sm:$0xff]
    %v69 = vld [vmem:[%s2 + $0x8] sm:$0xff]
    %v70 = vld [vmem:[%s2 + $0x10] sm:$0xff]
    %v71 = vld [vmem:[%s2 + $0x18] sm:$0xff]
    %v72 = vld [vmem:[%s2 + $0x20] sm:$0xff]
    %v73 = vld [vmem:[%s2 + $0x28] sm:$0xff]
    %v74 = vld [vmem:[%s2 + $0x30] sm:$0xff]
    %v75 = vld [vmem:[%s2 + $0x38] sm:$0xff]
    %v76 = vld [vmem:[%s2 + $0x40] sm:$0xff]
    %v77 = vld [vmem:[%s2 + $0x48] sm:$0xff]
    %v78 = vld [vmem:[%s2 + $0x50] sm:$0xff]
    %v79 = vld [vmem:[%s2 + $0x58] sm:$0xff]
    %v80 = vld [vmem:[%s2 + $0x60] sm:$0xff]
    %v81 = vld [vmem:[%s2 + $0x68] sm:$0xff]
    %v82 = vld [vmem:[%s2 + $0x70] sm:$0xff]
    %v83 = vld [vmem:[%s2 + $0x78] sm:$0xff]
    %v84 = vld [vmem:[%s2 + $0x80] sm:$0xff]
    %v85 = vld [vmem:[%s2 + $0x88] sm:$0xff]
    %v86 = vld [vmem:[%s2 + $0x90] sm:$0xff]
    %v87 = vld [vmem:[%s2 + $0x98] sm:$0xff]
    %v88 = vld [vmem:[%s2 + $0xa0] sm:$0xff]
    %v89 = vld [vmem:[%s2 + $0xa8] sm:$0xff]
    %v90 = vld [vmem:[%s2 + $0xb0] sm:$0xff]
    %v91 = vld [vmem:[%s2 + $0xb8] sm:$0xff]
    %v92 = vld [vmem:[%s2 + $0xc0] sm:$0xff]
    %v93 = vld [vmem:[%s2 + $0xc8] sm:$0x1]
    %vm94 = vcmask 596992
    %v96 = vsel %vm94, %v54, 0
    %vm98 = vcmask 1040384
    %v100 = vsel %vm98, %v93, 0
    %102 = vmatprep.subr.mxu0 0.0
    %103 = vmatpush1.msra.mxu0 %v68
    %104 = vmatprep.subr.mxu0 0.0
    %105 = vmatpush1.msra.mxu0 %v69
    %106 = vmatprep.subr.mxu0 0.0
    %107 = vmatpush1.msra.mxu0 %v70
    %108 = vmatprep.subr.mxu0 0.0
    %109 = vmatpush1.msra.mxu0 %v71
    %110 = vmatprep.subr.mxu0 0.0
    %111 = vmatpush1.msra.mxu0 %v72
    %112 = vmatprep.subr.mxu0 0.0
    %113 = vmatpush1.msra.mxu0 %v73
    %114 = vmatprep.subr.mxu0 0.0
    %115 = vmatpush1.msra.mxu0 %v74
    %116 = vmatprep.subr.mxu0 0.0
    %117 = vmatpush1.msra.mxu0 %v75
    %118 = vmatprep.subr.mxu0 0.0
    %119 = vmatpush1.msra.mxu0 %v76
    %120 = vmatprep.subr.mxu0 0.0
    %121 = vmatpush1.msra.mxu0 %v77
    %122 = vmatprep.subr.mxu0 0.0
    %123 = vmatpush1.msra.mxu0 %v78
    %124 = vmatprep.subr.mxu0 0.0
    %125 = vmatpush1.msra.mxu0 %v79
    %126 = vmatprep.subr.mxu0 0.0
    %127 = vmatpush1.msra.mxu0 %v80
    %128 = vmatprep.subr.mxu0 0.0
    %129 = vmatpush1.msra.mxu0 %v81
    %130 = vmatprep.subr.mxu0 0.0
    %131 = vmatpush1.msra.mxu0 %v82
    %132 = vmatprep.subr.mxu0 0.0
    %133 = vmatpush1.msra.mxu0 %v83
    %134 = vmatprep.subr.mxu0 0.0
    %135 = vmatpush1.msra.mxu0 %v84
    %136 = vmatprep.subr.mxu0 0.0
    %137 = vmatpush1.msra.mxu0 %v85
    %138 = vmatprep.subr.mxu0 0.0
    %139 = vmatpush1.msra.mxu0 %v86
    %140 = vmatprep.subr.mxu0 0.0
    %141 = vmatpush1.msra.mxu0 %v87
    %142 = vmatprep.subr.mxu0 0.0
    %143 = vmatpush1.msra.mxu0 %v88
    %144 = vmatprep.subr.mxu0 0.0
    %145 = vmatpush1.msra.mxu0 %v89
    %146 = vmatprep.subr.mxu0 0.0
    %147 = vmatpush1.msra.mxu0 %v90
    %148 = vmatprep.subr.mxu0 0.0
    %149 = vmatpush1.msra.mxu0 %v91
    %150 = vmatprep.subr.mxu0 0.0
    %151 = vmatpush1.msra.mxu0 %v92
    %152 = vmatprep.subr.mxu0 0.0
    %153 = vmatpush1.msra.mxu0 %v100
    %154 = vmatprep.subr.mxu0 0.0
    %155 = vmatpush1.msra.mxu0 0.0
    %156 = vmatprep.subr.mxu0 0.0
    %157 = vmatpush1.msra.mxu0 0.0
    %158 = vmatprep.subr.mxu0 0.0
    %159 = vmatpush1.msra.mxu0 0.0
    %160 = vmatprep.subr.mxu0 0.0
    %161 = vmatpush1.msra.mxu0 0.0
    %162 = vmatprep.subr.mxu0 0.0
    %163 = vmatpush1.msra.mxu0 0.0
    %164 = vmatprep.subr.mxu0 0.0
    %165 = vmatpush1.msra.mxu0 0.0
    %166 = vmatprep.mubr.f32.mxu0 %v96
    %167 = vmatmul.mubr.f32.gmra.mrb[0].mxu0 %v53
    %v168 = vpop.f32.mrb[0].mxu0
    %v169 = vadd.f32 0.0, %v168
    %v170 = vpop.f32.mrb[0].mxu0
    %171 = vdwg.mxu0
    %vm172 = vcmask 826368
    %v174 = vsel %vm172, %v44, 0
    %vm176 = vcmask 1044480
    %v178 = vsel %vm176, %v67, 0
    %180 = vmatprep.subr.mxu0 0.0
    %181 = vmatpush1.msra.mxu0 %v55
    %182 = vmatprep.subr.mxu0 0.0
    %183 = vmatpush1.msra.mxu0 %v56
    %184 = vmatprep.subr.mxu0 0.0
    %185 = vmatpush1.msra.mxu0 %v57
    %186 = vmatprep.subr.mxu0 0.0
    %187 = vmatpush1.msra.mxu0 %v58
    %188 = vmatprep.subr.mxu0 0.0
    %189 = vmatpush1.msra.mxu0 %v59
    %190 = vmatprep.subr.mxu0 0.0
    %191 = vmatpush1.msra.mxu0 %v60
    %192 = vmatprep.subr.mxu0 0.0
    %193 = vmatpush1.msra.mxu0 %v61
    %194 = vmatprep.subr.mxu0 0.0
    %195 = vmatpush1.msra.mxu0 %v62
    %196 = vmatprep.subr.mxu0 0.0
    %197 = vmatpush1.msra.mxu0 %v63
    %198 = vmatprep.subr.mxu0 0.0
    %199 = vmatpush1.msra.mxu0 %v64
    %200 = vmatprep.subr.mxu0 0.0
    %201 = vmatpush1.msra.mxu0 %v65
    %202 = vmatprep.subr.mxu0 0.0
    %203 = vmatpush1.msra.mxu0 %v66
    %204 = vmatprep.subr.mxu0 0.0
    %205 = vmatpush1.msra.mxu0 %v178
    %206 = vmatprep.subr.mxu0 0.0
    %207 = vmatpush1.msra.mxu0 0.0
    %208 = vmatprep.subr.mxu0 0.0
    %209 = vmatpush1.msra.mxu0 0.0
    %210 = vmatprep.subr.mxu0 0.0
    %211 = vmatpush1.msra.mxu0 0.0
    %212 = vmatprep.subr.mxu0 0.0
    %213 = vmatpush1.msra.mxu0 0.0
    %214 = vmatprep.subr.mxu0 0.0
    %215 = vmatpush1.msra.mxu0 0.0
    %216 = vmatprep.subr.mxu0 0.0
    %217 = vmatpush1.msra.mxu0 0.0
    %218 = vmatprep.subr.mxu0 0.0
    %219 = vmatpush1.msra.mxu0 0.0
    %220 = vmatprep.subr.mxu0 0.0
    %221 = vmatpush1.msra.mxu0 0.0
    %222 = vmatprep.subr.mxu0 0.0
    %223 = vmatpush1.msra.mxu0 0.0
    %224 = vmatprep.subr.mxu0 0.0
    %225 = vmatpush1.msra.mxu0 0.0
    %226 = vmatprep.subr.mxu0 0.0
    %227 = vmatpush1.msra.mxu0 0.0
    %228 = vmatprep.subr.mxu0 0.0
    %229 = vmatpush1.msra.mxu0 0.0
    %230 = vmatprep.subr.mxu0 0.0
    %231 = vmatpush1.msra.mxu0 0.0
    %232 = vmatprep.subr.mxu0 0.0
    %233 = vmatpush1.msra.mxu0 0.0
    %234 = vmatprep.subr.mxu0 0.0
    %235 = vmatpush1.msra.mxu0 0.0
    %236 = vmatprep.subr.mxu0 0.0
    %237 = vmatpush1.msra.mxu0 0.0
    %238 = vmatprep.subr.mxu0 0.0
    %239 = vmatpush1.msra.mxu0 0.0
    %240 = vmatprep.subr.mxu0 0.0
    %241 = vmatpush1.msra.mxu0 0.0
    %242 = vmatprep.subr.mxu0 0.0
    %243 = vmatpush1.msra.mxu0 0.0
    %244 = vmatprep.mubr.f32.mxu0 0.0
    %245 = vmatmul.mubr.f32.gmra.mrb[0].mxu0 %v174
    %v246 = vpop.f32.mrb[0].mxu0
    %v247 = vadd.f32 %v169, %v246
    %v248 = vpop.f32.mrb[0].mxu0
    %249 = vdwg.mxu0
    %v250 = vld [vmem:[%s3] sm:$0xff]
    %v251 = vld [vmem:[%s3 + $0x8] sm:$0xff]
    %v252 = vld [vmem:[%s3 + $0x10] sm:$0x3]
    %254 = vrot.lane.b32.xlu0 %v35, 126
    %v255 = vpop.permute.xlu0 %254
    %vm256 = vcmask 146432
    %v257 = vsel %vm256, %v255, 0
    %vm259 = vcmask 1041408
    %v261 = vsel %vm259, %v252, 0
    %263 = vmatprep.subr.mxu0 0.0
    %264 = vmatpush1.msra.mxu0 %v250
    %265 = vmatprep.subr.mxu0 0.0
    %266 = vmatpush1.msra.mxu0 %v251
    %267 = vmatprep.subr.mxu0 0.0
    %268 = vmatpush1.msra.mxu0 %v261
    %269 = vmatprep.subr.mxu0 0.0
    %270 = vmatpush1.msra.mxu0 0.0
    %271 = vmatprep.subr.mxu0 0.0
    %272 = vmatpush1.msra.mxu0 0.0
    %273 = vmatprep.subr.mxu0 0.0
    %274 = vmatpush1.msra.mxu0 0.0
    %275 = vmatprep.subr.mxu0 0.0
    %276 = vmatpush1.msra.mxu0 0.0
    %277 = vmatprep.subr.mxu0 0.0
    %278 = vmatpush1.msra.mxu0 0.0
    %279 = vmatprep.subr.mxu0 0.0
    %280 = vmatpush1.msra.mxu0 0.0
    %281 = vmatprep.subr.mxu0 0.0
    %282 = vmatpush1.msra.mxu0 0.0
    %283 = vmatprep.subr.mxu0 0.0
    %284 = vmatpush1.msra.mxu0 0.0
    %285 = vmatprep.subr.mxu0 0.0
    %286 = vmatpush1.msra.mxu0 0.0
    %287 = vmatprep.subr.mxu0 0.0
    %288 = vmatpush1.msra.mxu0 0.0
    %289 = vmatprep.subr.mxu0 0.0
    %290 = vmatpush1.msra.mxu0 0.0
    %291 = vmatprep.subr.mxu0 0.0
    %292 = vmatpush1.msra.mxu0 0.0
    %293 = vmatprep.subr.mxu0 0.0
    %294 = vmatpush1.msra.mxu0 0.0
    %295 = vmatprep.subr.mxu0 0.0
    %296 = vmatpush1.msra.mxu0 0.0
    %297 = vmatprep.subr.mxu0 0.0
    %298 = vmatpush1.msra.mxu0 0.0
    %299 = vmatprep.subr.mxu0 0.0
    %300 = vmatpush1.msra.mxu0 0.0
    %301 = vmatprep.subr.mxu0 0.0
    %302 = vmatpush1.msra.mxu0 0.0
    %303 = vmatprep.subr.mxu0 0.0
    %304 = vmatpush1.msra.mxu0 0.0
    %305 = vmatprep.subr.mxu0 0.0
    %306 = vmatpush1.msra.mxu0 0.0
    %307 = vmatprep.subr.mxu0 0.0
    %308 = vmatpush1.msra.mxu0 0.0
    %309 = vmatprep.subr.mxu0 0.0
    %310 = vmatpush1.msra.mxu0 0.0
    %311 = vmatprep.subr.mxu0 0.0
    %312 = vmatpush1.msra.mxu0 0.0
    %313 = vmatprep.subr.mxu0 0.0
    %314 = vmatpush1.msra.mxu0 0.0
    %315 = vmatprep.subr.mxu0 0.0
    %316 = vmatpush1.msra.mxu0 0.0
    %317 = vmatprep.subr.mxu0 0.0
    %318 = vmatpush1.msra.mxu0 0.0
    %319 = vmatprep.subr.mxu0 0.0
    %320 = vmatpush1.msra.mxu0 0.0
    %321 = vmatprep.subr.mxu0 0.0
    %322 = vmatpush1.msra.mxu0 0.0
    %323 = vmatprep.subr.mxu0 0.0
    %324 = vmatpush1.msra.mxu0 0.0
    %325 = vmatprep.subr.mxu0 0.0
    %326 = vmatpush1.msra.mxu0 0.0
    %327 = vmatprep.mubr.f32.mxu0 0.0
    %328 = vmatmul.mubr.f32.gmra.mrb[0].mxu0 %v257
    %v329 = vpop.f32.mrb[0].mxu0
    %v330 = vadd.f32 0.0, %v329
    %v331 = vpop.f32.mrb[0].mxu0
    %332 = vdwg.mxu0
    %v333 = vadd.f32 %v247, %v330
    %v334 = vld [vmem:[%s4] sm:$0x1]
    %v336 = vlaneseq
    %v337 = vshrl.u32 %v336, 7
    %v338 = vsub.s32 0, %v337
    %v339 = vrot.slane %v334, %v338
    %v341 = vadd.f32 %v333, %v339
    %v342 = vmax.f32 %v341, 0.0
    %v343 = vld [vmem:[%s5] sm:$0xff]
    %v344 = vld [vmem:[%s5 + $0x8] sm:$0xff]
    %v345 = vld [vmem:[%s5 + $0x10] sm:$0xff]
    %v346 = vld [vmem:[%s5 + $0x18] sm:$0xff]
    %v347 = vld [vmem:[%s6] sm:$0x1]
    %v349 = vlaneseq
    %v350 = vshrl.u32 %v349, 7
    %v351 = vsub.s32 0, %v350
    %v352 = vrot.slane %v347, %v351
    %vm354 = vcmask 261120
    %v356 = vsel %vm354, %v342, 0
    %358 = vmatprep.subr.mxu0 0.0
    %359 = vmatpush1.msra.mxu0 %v343
    %360 = vmatprep.subr.mxu0 0.0
    %361 = vmatpush1.msra.mxu0 %v344
    %362 = vmatprep.subr.mxu0 0.0
    %363 = vmatpush1.msra.mxu0 %v345
    %364 = vmatprep.subr.mxu0 0.0
    %365 = vmatpush1.msra.mxu0 %v346
    %366 = vmatprep.subr.mxu0 0.0
    %367 = vmatpush1.msra.mxu0 0.0
    %368 = vmatprep.subr.mxu0 0.0
    %369 = vmatpush1.msra.mxu0 0.0
    %370 = vmatprep.subr.mxu0 0.0
    %371 = vmatpush1.msra.mxu0 0.0
    %372 = vmatprep.subr.mxu0 0.0
    %373 = vmatpush1.msra.mxu0 0.0
    %374 = vmatprep.subr.mxu0 0.0
    %375 = vmatpush1.msra.mxu0 0.0
    %376 = vmatprep.subr.mxu0 0.0
    %377 = vmatpush1.msra.mxu0 0.0
    %378 = vmatprep.subr.mxu0 0.0
    %379 = vmatpush1.msra.mxu0 0.0
    %380 = vmatprep.subr.mxu0 0.0
    %381 = vmatpush1.msra.mxu0 0.0
    %382 = vmatprep.subr.mxu0 0.0
    %383 = vmatpush1.msra.mxu0 0.0
    %384 = vmatprep.subr.mxu0 0.0
    %385 = vmatpush1.msra.mxu0 0.0
    %386 = vmatprep.subr.mxu0 0.0
    %387 = vmatpush1.msra.mxu0 0.0
    %388 = vmatprep.subr.mxu0 0.0
    %389 = vmatpush1.msra.mxu0 0.0
    %390 = vmatprep.subr.mxu0 0.0
    %391 = vmatpush1.msra.mxu0 0.0
    %392 = vmatprep.subr.mxu0 0.0
    %393 = vmatpush1.msra.mxu0 0.0
    %394 = vmatprep.subr.mxu0 0.0
    %395 = vmatpush1.msra.mxu0 0.0
    %396 = vmatprep.subr.mxu0 0.0
    %397 = vmatpush1.msra.mxu0 0.0
    %398 = vmatprep.subr.mxu0 0.0
    %399 = vmatpush1.msra.mxu0 0.0
    %400 = vmatprep.subr.mxu0 0.0
    %401 = vmatpush1.msra.mxu0 0.0
    %402 = vmatprep.subr.mxu0 0.0
    %403 = vmatpush1.msra.mxu0 0.0
    %404 = vmatprep.subr.mxu0 0.0
    %405 = vmatpush1.msra.mxu0 0.0
    %406 = vmatprep.subr.mxu0 0.0
    %407 = vmatpush1.msra.mxu0 0.0
    %408 = vmatprep.subr.mxu0 0.0
    %409 = vmatpush1.msra.mxu0 0.0
    %410 = vmatprep.subr.mxu0 0.0
    %411 = vmatpush1.msra.mxu0 0.0
    %412 = vmatprep.subr.mxu0 0.0
    %413 = vmatpush1.msra.mxu0 0.0
    %414 = vmatprep.subr.mxu0 0.0
    %415 = vmatpush1.msra.mxu0 0.0
    %416 = vmatprep.subr.mxu0 0.0
    %417 = vmatpush1.msra.mxu0 0.0
    %418 = vmatprep.subr.mxu0 0.0
    %419 = vmatpush1.msra.mxu0 0.0
    %420 = vmatprep.subr.mxu0 0.0
    %421 = vmatpush1.msra.mxu0 0.0
    %422 = vmatprep.mubr.f32.mxu0 0.0
    %423 = vmatmul.mubr.f32.gmra.mrb[0].mxu0 %v356
    %v424 = vpop.f32.mrb[0].mxu0
    %v425 = vadd.f32 %v352, %v424
    %v426 = vpop.f32.mrb[0].mxu0
    %427 = vdwg.mxu0
    %v428 = vmax.f32 %v425, 0.0
    %v429 = vld [vmem:[%s7] sm:$0x1]
    %v431 = vlaneseq
    %v432 = vshrl.u32 %v431, 7
    %v433 = vsub.s32 0, %v432
    %v434 = vrot.slane %v429, %v433
    %v436 = vmul.f32 %v428, %v434
    %vm437 = vcmask 130048
    %v438 = vsel %vm437, %v436, 0.0
    %439 = vadd.xlane.f32.xlu0 %v438
    %v440 = vpop.xlane.xlu0 %439
    %v441 = vld [vmem:[#allocation2] sm:$0x1]
    %v443 = vlaneseq
    %v444 = vshrl.u32 %v443, 7
    %v445 = vsub.s32 0, %v444
    %v446 = vrot.slane %v441, %v445
    %v448 = vadd.f32 %v440, %v446
    %450 = vset.pattern.permute.xlu0 0
    %451 = vperm.xlu0 %450, %v448
    %v452 = vpop.permute.xlu0 %451
    %454 = vst [vmem:[#allocation3] sm:$0xff] %v452
    // Predicated region
    $region38: #{tpu_custom_call.1} parent=1 // pred_check
      _
    $region39: #{tpu_custom_call.1} parent=1 // pred_check_branch
      %456 = sbr.rel (0) target = $region41
    $region40: #{tpu_custom_call.1} parent=1 // pred_region
      %s458 = ssub.s32 128, 128
      %459 = vsyncadd [#allocation4], %s458
      %s461 = sshll.u32 [#allocation3], 4
      %s462 = int_to_ptr.vmem [resolvable:$true] %s461
      %464 = dma.vmem_to_hbm [thread:$0]  %s462, 128, %s9, [#allocation4]
    $region41: #{tpu_custom_call.1} parent=1 // pred_fallthru
      _
    // Predicated region
    $region42: #{tpu_custom_call.1} parent=1 // pred_check
      _
    $region43: #{tpu_custom_call.1} parent=1 // pred_check_branch
      %466 = sbr.rel (0) target = $region45
    $region44: #{tpu_custom_call.1} parent=1 // pred_region
      %467 = dma.done [#allocation4], 128
    $region45: #{tpu_custom_call.1} parent=1 // pred_fallthru
      _
    %468 = vsyncpa [#allocation4], 1

</llo_original>
